<compile_context>
chip_gen: v7x
topology: tpu7x:2x2x1
jax: 0.10.0
libtpu: 0.0.40
codegen_flags: <defaults>
</compile_context>

<pallas_src>
import math

import jax
import jax.numpy as jnp
import numpy as np
from jax.experimental import pallas as pl
from jax.experimental.pallas import tpu as pltpu


def _round_up(x, m):
    return ((x + m - 1) // m) * m


def _pe_kernel(consts_ref, o_ref):
    """Computes one (TR, L) block of the flattened PE buffer.

    consts_ref: (2, L) per-lane constants:
        consts[0, l] = scale[l] = k * inv_freq[l]
        consts[1, l] = base[l]  = pos_off[l] * inv_freq[l] + phase[l]
    o_ref: (TR, L) output block; angle[r, l] = (row0 + r) * scale[l] + base[l].
    """
    TR, _ = o_ref.shape
    row0 = (pl.program_id(0) * TR).astype(jnp.float32)
    # (TR, 1) column of global packed-row indices; broadcasts against (1, L).
    r = jax.lax.broadcasted_iota(jnp.int32, (TR, 1), 0).astype(jnp.float32) + row0
    scale = consts_ref[0:1, :]
    base = consts_ref[1:2, :]
    # One mul + one add + one EUP transcendental per output element.
    o_ref[...] = jnp.sin(r * scale + base)


def sinusoidal_positional_encoding(x):
    """Pallas equivalent of SinusoidalPositionalEncoding.forward.

    Args:
      x: (batch, seq_len, input_dim) array (values unused, only shape matters).
    Returns:
      (1, seq_len, input_dim) float32 positional encodings.
    """
    _, seq_len, input_dim = x.shape
    assert input_dim % 2 == 0, "input_dim must be even (matches PyTorch module)"

    # Lane-dense flattened layout: pack k consecutive positions per row so the
    # lane width (k * input_dim) is a multiple of 128 -> unmasked full-width vst.
    k = 128 // math.gcd(input_dim, 128)
    lane = k * input_dim
    rows = (seq_len + k - 1) // k           # pad positions up; tail sliced off below

    # ---- per-lane folded constants, built with numpy (no per-call device ops).
    l_idx = np.arange(lane)
    d = l_idx % input_dim                                   # feature index
    d_even = (d & ~1).astype(np.float64)                    # low bit cleared
    inv_freq = np.exp(d_even * (-(math.log(10000.0) / input_dim)))
    phase = np.where((d & 1) == 0, 0.0, math.pi / 2.0)      # cos = sin(. + pi/2)
    pos_off = (l_idx // input_dim).astype(np.float64)       # offset within packed row
    scale = k * inv_freq
    base = pos_off * inv_freq + phase
    consts = jnp.asarray(np.stack([scale, base]).astype(np.float32))  # (2, lane)

    # ---- row tiling: ~4 MiB output blocks (2x buffered fits v5e's 16 MiB scoped
    # VMEM; amortizes per-step overhead on v6e/v7x) and >=4 grid steps when rows
    # allow, so v7x can shard the "parallel" axis across its two TensorCores.
    max_block_bytes = 4 * 1024 * 1024
    tr_cap = max(8, (max_block_bytes // (lane * 4)) // 8 * 8)
    tr_target = _round_up(max(1, (rows + 3) // 4), 8)
    tr = min(tr_cap, tr_target)
    rows_padded = _round_up(rows, tr)
    grid = (rows_padded // tr,)

    out_flat = pl.pallas_call(
        _pe_kernel,
        out_shape=jax.ShapeDtypeStruct((rows_padded, lane), jnp.float32),
        grid=grid,
        in_specs=[pl.BlockSpec((2, lane), lambda i: (0, 0))],
        out_specs=pl.BlockSpec((tr, lane), lambda i: (i, 0)),
        compiler_params=pltpu.CompilerParams(
            dimension_semantics=("parallel",)  # shard row tiles across v7x's 2 TCs
        ),
    )(consts)

    # Row-major flat order of (rows, k*D) == (position, D); drop the padded tail.
    return out_flat.reshape(-1)[: seq_len * input_dim].reshape(1, seq_len, input_dim)


def _reference(seq_len, input_dim):
    # Pure-JAX reference mirroring the PyTorch buffer construction.
    position = jnp.arange(seq_len, dtype=jnp.float32)[:, None]
    div_term = jnp.exp(
        jnp.arange(0, input_dim, 2, dtype=jnp.float32)
        * (-(math.log(10000.0) / input_dim))
    )
    pe = jnp.zeros((1, seq_len, input_dim), jnp.float32)
    pe = pe.at[0, :, 0::2].set(jnp.sin(position * div_term))
    pe = pe.at[0, :, 1::2].set(jnp.cos(position * div_term))
    return pe


if __name__ == "__main__":
    key = jax.random.PRNGKey(0)
    batch, seq_len, input_dim = 2, 8, 32
    x = jax.random.normal(key, (batch, seq_len, input_dim), dtype=jnp.float32)

    out = jax.block_until_ready(sinusoidal_positional_encoding(x))
    ref = _reference(seq_len, input_dim)
    assert out.shape == (1, seq_len, input_dim)
    assert jnp.allclose(out, ref, atol=1e-5, rtol=1e-5)

    # Also exercise the padded-rows path (seq_len not a multiple of k).
    x2 = jax.random.normal(key, (1, 10, 32), dtype=jnp.float32)
    out2 = jax.block_until_ready(sinusoidal_positional_encoding(x2))
    assert out2.shape == (1, 10, 32)
    assert jnp.allclose(out2, _reference(10, 32), atol=1e-5, rtol=1e-5)

    print("KERNEL_OK")
</pallas_src>

<mosaic_0001>
module attributes {stable_mosaic.version = 11 : i64} {
  func.func @_pe_kernel(%arg0: i32, %arg1: memref<2x128xf32, #tpu.memory_space<vmem>>, %arg2: memref<8x128xf32, #tpu.memory_space<vmem>>) attributes {dimension_semantics = [#tpu.dimension_semantics<parallel>], iteration_bounds = array<i64: 1>, scalar_prefetch = 0 : i64, scratch_operands = 0 : i64, tpu.core_type = #tpu.core_type<tc>, window_params = [{pipeline_mode = #tpu.pipeline_mode<synchronous>, transform_indices = @transform_0, window_bounds = array<i64: 2, 128>}, {transform_indices = @transform_1, window_bounds = array<i64: 8, 128>}]} {
    %c8_i32 = arith.constant 8 : i32
    %0 = arith.muli %arg0, %c8_i32 : i32
    %1 = arith.sitofp %0 : i32 to f32
    %2 = tpu.iota {dimensions = array<i32: 0>} : vector<8x1xi32>
    %3 = arith.sitofp %2 : vector<8x1xi32> to vector<8x1xf32>
    %4 = vector.broadcast %1 : f32 to vector<8x1xf32>
    %5 = arith.addf %3, %4 : vector<8x1xf32>
    %c0 = arith.constant 0 : index
    %c0_0 = arith.constant 0 : index
    %6 = vector.load %arg1[%c0, %c0_0] : memref<2x128xf32, #tpu.memory_space<vmem>>, vector<1x128xf32>
    %c1 = arith.constant 1 : index
    %c0_1 = arith.constant 0 : index
    %7 = vector.load %arg1[%c1, %c0_1] : memref<2x128xf32, #tpu.memory_space<vmem>>, vector<1x128xf32>
    %8 = vector.broadcast %5 : vector<8x1xf32> to vector<8x128xf32>
    %9 = vector.broadcast %6 : vector<1x128xf32> to vector<8x128xf32>
    %10 = arith.mulf %8, %9 : vector<8x128xf32>
    %11 = vector.broadcast %7 : vector<1x128xf32> to vector<8x128xf32>
    %12 = arith.addf %10, %11 : vector<8x128xf32>
    %13 = math.sin %12 : vector<8x128xf32>
    %c0_2 = arith.constant 0 : index
    %c0_3 = arith.constant 0 : index
    %14 = vector.load %arg2[%c0_2, %c0_3] : memref<8x128xf32, #tpu.memory_space<vmem>>, vector<8x128xf32>
    tpu.vector_store %arg2[%c0_2, %c0_3], %13 {strides = array<i32>} : memref<8x128xf32, #tpu.memory_space<vmem>>, vector<8x128xf32>,
    return
  }
  func.func @transform_0(%arg0: i32) -> (i32, i32) {
    %c0_i32 = arith.constant 0 : i32
    %c0_i32_0 = arith.constant 0 : i32
    %c0_i32_1 = arith.constant 0 : i32
    return %c0_i32, %c0_i32_0 : i32, i32
  }
  func.func @transform_1(%arg0: i32) -> (i32, i32) {
    %c0_i32 = arith.constant 0 : i32
    %c0_i32_0 = arith.constant 0 : i32
    return %arg0, %c0_i32 : i32, i32
  }
}

</mosaic_0001>

<llo_original>
// kernel: tpu_custom_call.1
$region0: #{tpu_custom_call.1}
  #allocation0 [shape = 'u32[]', space=smem, size = 0x4, offset = 0x4, fixed_abs, tag = 'smem constant byte address 0x4 - core index']
  #allocation1 [shape = 'u32[144,128]{1,0:T(1,128)}', space=vmem, size = 0x12000, scoped, tag = 'internal scratch']
  %s0 = inlined_call_operand.hbm [shape: f32[2,128], index: 0, kind: input, shape index: {}]
  %s1 = inlined_call_operand.hbm [shape: f32[8,128], index: 1, kind: output, shape index: {}]
  %s2 = sld [smem:[#allocation0]]
  $region18: #{tpu_custom_call.1} parent=0
    _
  %s4 = ssub.s32 1, %s2
  %s5 = scalar_select 0, %s4, %s2
  $region1: #{tpu_custom_call.1} parent=0
    #allocation2 [shape = 'u8[1024]{0}', space=vmem, size = 0x400, scoped, tag = 'input window, operand 0, single buffered']
    #allocation3 [shape = 's32[1]{0}', space=sflag, size = 0x4, scoped, tag = 'scoped memory for tpu_custom_call.1']
    #allocation4 [shape = 's32[1]{0}', space=sflag, size = 0x4, scoped, tag = 'scoped memory for tpu_custom_call.1']
    #allocation5 [shape = 'u8[4096]{0}', space=vmem, size = 0x1000, scoped, tag = 'output window, operand 0, single buffered']
    %6 = vsyncpa [#allocation3], 0
    %7 = vsyncpa [#allocation4], 0
    // Predicated region
    $region2: #{tpu_custom_call.1} parent=1 // pred_check
      _
    $region3: #{tpu_custom_call.1} parent=1 // pred_check_branch
      %9 = sbr.rel (0) target = $region5
    $region4: #{tpu_custom_call.1} parent=1 // pred_region
      %s11 = ssub.s32 32, 32
      %12 = vsyncadd [#allocation3], %s11
      %s14 = sshll.u32 [#allocation2], 4
      %s15 = int_to_ptr.vmem [resolvable:$true] %s14
      %17 = dma.hbm_to_vmem [thread:$0]  %s0, 32, %s15, [#allocation3]
    $region5: #{tpu_custom_call.1} parent=1 // pred_fallthru
      _
    // Predicated region
    $region6: #{tpu_custom_call.1} parent=1 // pred_check
      _
    $region7: #{tpu_custom_call.1} parent=1 // pred_check_branch
      %19 = sbr.rel (0) target = $region9
    $region8: #{tpu_custom_call.1} parent=1 // pred_region
      %20 = dma.done [#allocation3], 32
    $region9: #{tpu_custom_call.1} parent=1 // pred_fallthru
      _
    %s21 = smul.u32 0, 8
    %s22 = scvt.s32.f32 %s21
    %v23 = vlaneseq
    %v24 = vshrl.u32 %v23, 7
    %v25 = vcvt.s32.f32 %v24
    %v26 = vstv %s22
    %v27 = vadd.f32 %v25, %v26
    %v28 = vld [vmem:[#allocation2] sm:$0x1]
    %v29 = vld [vmem:[#allocation2 + $0x1] sm:$0x1]
    %v30 = vlaneseq
    %v31 = vshrl.u32 %v30, 7
    %v32 = vsub.s32 0, %v31
    %v33 = vrot.slane %v28, %v32
    %v34 = vmul.f32 %v27, %v33
    %v35 = vlaneseq
    %v36 = vshrl.u32 %v35, 7
    %v37 = vsub.s32 0, %v36
    %v38 = vrot.slane %v29, %v37
    %v39 = vadd.f32 %v34, %v38
    %v40 = vand.u32 2147483647, %v39
    %vm41 = vcmp.le.f32.partialorder %v40, 0.7853982
    %vm42 = vcmp.lt.s32.totalorder %v39, 0
    %v43 = vand.u32 %v39, 2139095040
    %v44 = vshrl.u32 %v43, 23
    %v45 = vsub.s32 %v44, 127
    %v46 = vand.u32 2147483647, %v39
    %v47 = vand.u32 %v46, 8388607
    %v48 = vor.u32 %v47, 8388608
    %v49 = vsub.s32 0, %v48
    %v50 = vadd.s32 %v45, 1
    %vm51 = vcmp.gt.s32.totalorder %v50, 0
    %v52 = vsel %vm51, %v50, 0
    %v53 = vshrl.u32 %v52, 5
    %v54 = vand.u32 %v52, 31
    %v55 = vsub.s32 32, %v54
    %v56 = vshrl.u32 683565275, %v55
    %v57 = vshll.u32 683565275, %v54
    %v58 = vshrl.u32 2475754826, %v55
    %v59 = vor.u32 %v57, %v58
    %v60 = vshll.u32 2475754826, %v54
    %v61 = vshrl.u32 2131351028, %v55
    %v62 = vor.u32 %v60, %v61
    %v63 = vshll.u32 2131351028, %v54
    %v64 = vshrl.u32 2102212464, %v55
    %v65 = vor.u32 %v63, %v64
    %v66 = vshll.u32 2102212464, %v54
    %v67 = vshrl.u32 920167782, %v55
    %v68 = vor.u32 %v66, %v67
    %v69 = vshll.u32 920167782, %v54
    %v70 = vshrl.u32 1326507024, %v55
    %v71 = vor.u32 %v69, %v70
    %vm72 = vcmp.lt.s32.totalorder %v53, 1
    %vm73 = vcmp.lt.s32.totalorder %v53, 2
    %vm74 = vcmp.lt.s32.totalorder %v53, 3
    %vm75 = vcmp.lt.s32.totalorder %v53, 4
    %v76 = vsel %vm72, %v56, %v59
    %v77 = vsel %vm75, %v65, 2102212464
    %v78 = vsel %vm74, %v62, %v77
    %v79 = vsel %vm73, %v76, %v78
    %v80 = vsel %vm72, %v59, %v62
    %v81 = vsel %vm75, %v68, 920167782
    %v82 = vsel %vm74, %v65, %v81
    %v83 = vsel %vm73, %v80, %v82
    %v84 = vsel %vm72, %v62, %v65
    %v85 = vsel %vm75, %v71, 1326507024
    %v86 = vsel %vm74, %v68, %v85
    %v87 = vsel %vm73, %v84, %v86
    %v88 = vshll.u32 %v48, 8
    %v89 = vmul.u32.u64.compose %v88, %v87
    %v90 = vextract.low.u32 %v89
    %v91 = vextract.high.u32 %v89
    %v92 = vmul.u32.u64.compose %v88, %v83
    %v93 = vextract.low.u32 %v92
    %v94 = vextract.high.u32 %v92
    %v95 = vmul.u32 %v88, %v79
    %v96 = vadd.s32 %v91, %v93
    %vm97 = vc.u32 %v91, %v93
    %v98 = vadd.s32 %v94, 1
    %v99 = vsel %vm97, %v98, %v94
    %v100 = vadd.s32 %v95, %v99
    %v101 = vadd.s32 %v100, 536870912
    %v102 = vshrl.u32 %v101, 30
    %v103 = vshll.u32 %v102, 30
    %v104 = vsub.s32 %v100, %v103
    %vm105 = vcmp.lt.s32.totalorder %v104, 0
    %v106 = vsub.s32 0, %v104
    %v107 = vsel %vm105, %v106, %v104
    %v108 = vclz %v107
    %v109 = vsub.s32 %v108, 2
    %vm110 = vcmp.gt.s32.totalorder 0, %v109
    %v111 = vsel %vm110, 0, %v109
    %v112 = vsub.s32 32, %v111
    %v113 = vshll.u32 %v104, %v111
    %v114 = vshrl.u32 %v96, %v112
    %v115 = vor.u32 %v113, %v114
    %v116 = vsub.s32 4294967266, %v111
    %v117 = vadd.s32 %v116, 127
    %v118 = vshll.u32 %v117, 23
    %v119 = vor.u32 4788187, %v118
    %v120 = vand.u32 2147483647, %v119
    %v122 = vcvt.s32.f32 %v115
    %v123 = vmul.f32 %v122, %v120
    %v124 = vxor.u32 %v123, 2147483648
    %v125 = vsel %vm42, %v124, %v123
    %v126 = vsub.s32 4, %v102
    %v127 = vsel %vm42, %v126, %v102
    %v128 = vsel %vm41, %v39, %v125
    %v129 = vsel %vm41, 0, %v127
    %v130 = vcosq.f32.pop %v128
    %v131 = vsinq.f32.pop %v128
    %vm132 = vweird.f32 %v39
    %v133 = vadd.s32 %v129, 3
    %v134 = vand.u32 %v133, 3
    %vm135 = vcmp.lt.s32.totalorder %v134, 2
    %vm136 = vcmp.eq.s32.totalorder %v134, 0
    %v137 = vxor.u32 %v131, 2147483648
    %v138 = vsel %vm136, %v130, %v137
    %vm139 = vcmp.eq.s32.totalorder %v134, 2
    %v140 = vxor.u32 %v130, 2147483648
    %v141 = vsel %vm139, %v140, %v131
    %v142 = vsel %vm135, %v138, %v141
    %v143 = vsel %vm132, nan, %v142
    %144 = vst [vmem:[#allocation5] sm:$0xff] %v143
    // Predicated region
    $region10: #{tpu_custom_call.1} parent=1 // pred_check
      _
    $region11: #{tpu_custom_call.1} parent=1 // pred_check_branch
      %146 = sbr.rel (0) target = $region13
    $region12: #{tpu_custom_call.1} parent=1 // pred_region
      %s148 = ssub.s32 128, 128
      %149 = vsyncadd [#allocation4], %s148
      %s151 = sshll.u32 [#allocation5], 4
      %s152 = int_to_ptr.vmem [resolvable:$true] %s151
      %154 = dma.vmem_to_hbm [thread:$0]  %s152, 128, %s1, [#allocation4]
    $region13: #{tpu_custom_call.1} parent=1 // pred_fallthru
      _
    // Predicated region
    $region14: #{tpu_custom_call.1} parent=1 // pred_check
      _
    $region15: #{tpu_custom_call.1} parent=1 // pred_check_branch
      %156 = sbr.rel (0) target = $region17
    $region16: #{tpu_custom_call.1} parent=1 // pred_region
      %157 = dma.done [#allocation4], 128
    $region17: #{tpu_custom_call.1} parent=1 // pred_fallthru
      _
    %158 = vsyncpa [#allocation3], 1
    %159 = vsyncpa [#allocation4], 1

</llo_original>
